<compile_context>
chip_gen: v7x
topology: tpu7x:2x2x1
jax: 0.10.0
libtpu: 0.0.40
codegen_flags: <defaults>
</compile_context>

<pallas_src>
import functools

import jax
import jax.numpy as jnp
import numpy as np
from jax.experimental import pallas as pl
from jax.experimental.pallas import tpu as pltpu

BN_EPS = 1e-5
LANE = 128


def _round_up(x, m):
    return (x + m - 1) // m * m


@functools.lru_cache(maxsize=1)
def _vmem_budget_bytes():
    cap = 64 * 1024 * 1024  # conservative default (v7x per-TC) if the query fails
    try:
        cap = int(getattr(pltpu.get_tpu_info(), "vmem_capacity_bytes", cap))
    except Exception:
        pass
    return max(32 * 1024 * 1024, min(96 * 1024 * 1024, (cap * 3) // 4))


# ---------------------------------------------------------------------------
# Pallas kernel: tiled matmul + folded-BN bias + optional residual + optional relu.
# grid = (M tiles, Cout tiles, K tiles); K (reduction) is the last, "arbitrary" axis.
# For f32 outputs the accumulator IS o_ref (no scratch); otherwise a f32 VMEM scratch
# accumulates and the epilogue casts to the output dtype.
# ---------------------------------------------------------------------------
def _make_kernel(*, relu, has_residual, use_scratch):
    def kernel(*refs):
        if use_scratch:
            refs, acc_ref = refs[:-1], refs[-1]
        else:
            acc_ref = None
        if has_residual:
            p_ref, w_ref, b_ref, r_ref, o_ref = refs
        else:
            p_ref, w_ref, b_ref, o_ref = refs
            r_ref = None
        acc = acc_ref if acc_ref is not None else o_ref

        k = pl.program_id(2)

        @pl.when(k == 0)
        def _init():
            acc[...] = jnp.zeros_like(acc)

        acc[...] += jnp.dot(p_ref[...], w_ref[...], preferred_element_type=jnp.float32)

        @pl.when(k == pl.num_programs(2) - 1)
        def _epilogue():
            y = acc[...] + b_ref[...]
            if r_ref is not None:
                y = y + r_ref[...].astype(jnp.float32)
            if relu:
                y = jnp.maximum(y, 0.0)
            o_ref[...] = y.astype(o_ref.dtype)

    return kernel


# ---------------------------------------------------------------------------
# Tiled pallas_call wrapper: pads M/K/Cout (lane-dense stores), builds BlockSpecs,
# picks chip-aware tiles, slices the result back.
# ---------------------------------------------------------------------------
def _pad2(a, rows, cols):
    pr, pc = rows - a.shape[0], cols - a.shape[1]
    if pr or pc:
        a = jnp.pad(a, ((0, pr), (0, pc)))
    return a


def _pick_tile(total, prefs):
    for t in prefs:
        if total % t == 0:
            return t
    return LANE


def _fused_conv(patches, w, bias, *, relu, residual=None, out_dtype=jnp.float32):
    """patches: (M, K); w: (K, Co) with BN scale folded in; bias: (1, Co) f32.
    residual: optional (M, Co) identity shortcut added in the epilogue.
    Returns (M, Co) in out_dtype."""
    M, K = patches.shape
    Co = w.shape[1]

    Co_p = _round_up(Co, LANE)
    K_p = _round_up(K, LANE)
    tn = _pick_tile(Co_p, (256, 128))
    tk = _pick_tile(K_p, (1024, 512, 256, 128))
    tm = min(1024, _round_up(M, 8))
    M_p = _round_up(M, tm)
    if Co_p // tn < 2 and M_p // tm < 2 and tm > 8:
        # Keep >= 2 parallel grid tiles so v7x's second TensorCore is not idle.
        tm = _round_up((M + 1) // 2, 8)
        M_p = _round_up(M, tm)

    in_bytes = patches.dtype.itemsize
    out_bytes = jnp.dtype(out_dtype).itemsize
    res_bytes = residual.dtype.itemsize if residual is not None else 0
    use_scratch = jnp.dtype(out_dtype) != jnp.dtype(jnp.float32)
    budget = _vmem_budget_bytes()

    def _est(tm_, tk_):
        e = 2 * (tm_ * tk_ + tk_ * tn) * in_bytes + 2 * tn * 4   # double-buffered inputs
        e += 2 * tm_ * tn * out_bytes                             # output blocks
        e += 2 * tm_ * tn * res_bytes                             # residual blocks
        if use_scratch:
            e += tm_ * tn * 4                                     # f32 accumulator
        return e

    while _est(tm, tk) > budget and tk > LANE:
        tk //= 2
    while _est(tm, tk) > budget and tm > 8 and tm % 16 == 0 and M_p % (tm // 2) == 0:
        tm //= 2

    p_pad = _pad2(patches, M_p, K_p)
    w_pad = _pad2(w, K_p, Co_p)
    b_pad = _pad2(bias.astype(jnp.float32), 1, Co_p)

    in_specs = [
        pl.BlockSpec((tm, tk), lambda i, j, k: (i, k)),
        pl.BlockSpec((tk, tn), lambda i, j, k: (k, j)),
        pl.BlockSpec((1, tn), lambda i, j, k: (0, j)),
    ]
    args = [p_pad, w_pad, b_pad]
    if residual is not None:
        args.append(_pad2(residual, M_p, Co_p))
        in_specs.append(pl.BlockSpec((tm, tn), lambda i, j, k: (i, j)))

    kernel = _make_kernel(relu=relu, has_residual=residual is not None, use_scratch=use_scratch)
    scratch = [pltpu.VMEM((tm, tn), jnp.float32)] if use_scratch else []

    flops = 2 * M_p * K_p * Co_p
    bytes_accessed = sum(int(a.size) * a.dtype.itemsize for a in args) + M_p * Co_p * out_bytes

    out = pl.pallas_call(
        kernel,
        out_shape=jax.ShapeDtypeStruct((M_p, Co_p), out_dtype),
        grid=(M_p // tm, Co_p // tn, K_p // tk),
        in_specs=in_specs,
        out_specs=pl.BlockSpec((tm, tn), lambda i, j, k: (i, j)),
        scratch_shapes=scratch,
        compiler_params=pltpu.CompilerParams(
            dimension_semantics=("parallel", "parallel", "arbitrary"),
            vmem_limit_bytes=budget,
        ),
        cost_estimate=pl.CostEstimate(
            flops=flops, transcendentals=0, bytes_accessed=bytes_accessed),
    )(*args)
    return out[:M, :Co]


# ---------------------------------------------------------------------------
# Plain-JAX glue: im2col, BN folding, weight reshaping
# ---------------------------------------------------------------------------
def _im2col(x_nhwc, ksize, stride, pad):
    N, H, W, C = x_nhwc.shape
    xp = jnp.pad(x_nhwc, ((0, 0), (pad, pad), (pad, pad), (0, 0)))
    Ho = (H + 2 * pad - ksize) // stride + 1
    Wo = (W + 2 * pad - ksize) // stride + 1
    cols = []
    for kh in range(ksize):
        for kw in range(ksize):
            cols.append(xp[:, kh:kh + stride * Ho:stride, kw:kw + stride * Wo:stride, :])
    patches = jnp.concatenate(cols, axis=-1)  # (N, Ho, Wo, k*k*C): (kh, kw, c) ordering
    return patches.reshape(N * Ho * Wo, ksize * ksize * C), (N, Ho, Wo)


def _fold_bn(gamma, beta, mean, var):
    scale = gamma / jnp.sqrt(var + BN_EPS)
    bias = beta - mean * scale
    return scale[None, :], bias[None, :]  # (1, C) each, f32


def _w_to_mat(w_oihw):
    # (Cout, Cin, kh, kw) -> (kh*kw*Cin, Cout), matching _im2col's K ordering.
    Cout = w_oihw.shape[0]
    return jnp.transpose(w_oihw, (2, 3, 1, 0)).reshape(-1, Cout)


# ---------------------------------------------------------------------------
# ResidualBlock forward
# ---------------------------------------------------------------------------
@functools.partial(jax.jit, static_argnames=("stride", "compute_dtype"))
def residual_block(x_nchw, params, stride, compute_dtype=jnp.bfloat16):
    cd = compute_dtype
    # TODO(synk): accept/return NHWC to drop these two full-HBM transpose passes.
    x = jnp.transpose(x_nchw, (0, 2, 3, 1))  # NHWC
    x_cd = x.astype(cd)
    N, H, W, Cin = x.shape
    Cout = params["conv1_w"].shape[0]

    s1, b1 = _fold_bn(params["bn1_gamma"], params["bn1_beta"], params["bn1_mean"], params["bn1_var"])
    s2, b2 = _fold_bn(params["bn2_gamma"], params["bn2_beta"], params["bn2_mean"], params["bn2_var"])
    # Fold BN scale into the weight columns (f32), then cast operands to the compute dtype.
    w1 = (_w_to_mat(params["conv1_w"]) * s1).astype(cd)
    w2 = (_w_to_mat(params["conv2_w"]) * s2).astype(cd)

    # conv1 + bn1 + relu; h1 is written directly in the compute dtype.
    p1, (N, Ho, Wo) = _im2col(x_cd, 3, stride, 1)
    h1 = _fused_conv(p1, w1, b1, relu=True, out_dtype=cd)
    h1_nhwc = h1.reshape(N, Ho, Wo, Cout)

    # conv2 + bn2 + shortcut + relu: one fused kernel.
    p2, _ = _im2col(h1_nhwc, 3, 1, 1)
    if stride != 1 or Cin != Cout:
        # Projection shortcut folded into the main K reduction: [p2 | xs] @ [w2 ; ws].
        ss, bs = _fold_bn(params["bns_gamma"], params["bns_beta"], params["bns_mean"], params["bns_var"])
        ws = (_w_to_mat(params["sc_w"]) * ss).astype(cd)
        xs = x_cd[:, ::stride, ::stride, :].reshape(N * Ho * Wo, Cin)
        p_all = jnp.concatenate([p2, xs], axis=-1)
        w_all = jnp.concatenate([w2, ws], axis=0)
        out = _fused_conv(p_all, w_all, b2 + bs, relu=True, out_dtype=jnp.float32)
    else:
        res = x_cd.reshape(N * Ho * Wo, Cout)
        out = _fused_conv(p2, w2, b2, relu=True, residual=res, out_dtype=jnp.float32)

    out = out.reshape(N, Ho, Wo, Cout)
    return jnp.transpose(out, (0, 3, 1, 2)).astype(x_nchw.dtype)  # back to NCHW


# ---------------------------------------------------------------------------
# Pure-JAX reference (correctness check) and parameter init
# ---------------------------------------------------------------------------
def _ref_block(x, params, stride):
    def conv(x, w, s, p):
        return jax.lax.conv_general_dilated(
            x, w, (s, s), [(p, p), (p, p)], dimension_numbers=("NCHW", "OIHW", "NCHW"))

    def bn(x, g, b, m, v):
        g, b, m, v = [t[None, :, None, None] for t in (g, b, m, v)]
        return (x - m) / jnp.sqrt(v + BN_EPS) * g + b

    out = jax.nn.relu(bn(conv(x, params["conv1_w"], stride, 1),
                         params["bn1_gamma"], params["bn1_beta"], params["bn1_mean"], params["bn1_var"]))
    out = bn(conv(out, params["conv2_w"], 1, 1),
             params["bn2_gamma"], params["bn2_beta"], params["bn2_mean"], params["bn2_var"])
    if "sc_w" in params:
        res = bn(conv(x, params["sc_w"], stride, 0),
                 params["bns_gamma"], params["bns_beta"], params["bns_mean"], params["bns_var"])
    else:
        res = x
    return jax.nn.relu(out + res)


def _make_params(key, cin, cout, stride):
    ks = jax.random.split(key, 16)
    p = {
        "conv1_w": 0.1 * jax.random.normal(ks[0], (cout, cin, 3, 3), jnp.float32),
        "conv2_w": 0.1 * jax.random.normal(ks[1], (cout, cout, 3, 3), jnp.float32),
        "bn1_gamma": jax.random.uniform(ks[2], (cout,), jnp.float32, 0.5, 1.5),
        "bn1_beta": 0.1 * jax.random.normal(ks[3], (cout,), jnp.float32),
        "bn1_mean": 0.1 * jax.random.normal(ks[4], (cout,), jnp.float32),
        "bn1_var": jax.random.uniform(ks[5], (cout,), jnp.float32, 0.5, 1.5),
        "bn2_gamma": jax.random.uniform(ks[6], (cout,), jnp.float32, 0.5, 1.5),
        "bn2_beta": 0.1 * jax.random.normal(ks[7], (cout,), jnp.float32),
        "bn2_mean": 0.1 * jax.random.normal(ks[8], (cout,), jnp.float32),
        "bn2_var": jax.random.uniform(ks[9], (cout,), jnp.float32, 0.5, 1.5),
    }
    if stride != 1 or cin != cout:
        p.update({
            "sc_w": 0.1 * jax.random.normal(ks[10], (cout, cin, 1, 1), jnp.float32),
            "bns_gamma": jax.random.uniform(ks[11], (cout,), jnp.float32, 0.5, 1.5),
            "bns_beta": 0.1 * jax.random.normal(ks[12], (cout,), jnp.float32),
            "bns_mean": 0.1 * jax.random.normal(ks[13], (cout,), jnp.float32),
            "bns_var": jax.random.uniform(ks[14], (cout,), jnp.float32, 0.5, 1.5),
        })
    return p


if __name__ == "__main__":
    key = jax.random.PRNGKey(0)
    kx, kp1, kp2 = jax.random.split(key, 3)

    x = jax.random.normal(kx, (2, 4, 16, 16), jnp.float32)

    # Case A: downsampling block with projected shortcut (in=4, out=8, stride=2).
    params_a = _make_params(kp1, 4, 8, 2)
    ref_a = _ref_block(x, params_a, 2)
    out_a32 = jax.block_until_ready(residual_block(x, params_a, stride=2, compute_dtype=jnp.float32))
    np.testing.assert_allclose(np.asarray(out_a32), np.asarray(ref_a), rtol=1e-4, atol=1e-4)
    out_a16 = jax.block_until_ready(residual_block(x, params_a, stride=2))  # bf16 default path
    np.testing.assert_allclose(np.asarray(out_a16), np.asarray(ref_a), rtol=1e-1, atol=1e-1)

    # Case B: identity-shortcut block (in=out=4, stride=1).
    params_b = _make_params(kp2, 4, 4, 1)
    ref_b = _ref_block(x, params_b, 1)
    out_b32 = jax.block_until_ready(residual_block(x, params_b, stride=1, compute_dtype=jnp.float32))
    np.testing.assert_allclose(np.asarray(out_b32), np.asarray(ref_b), rtol=1e-4, atol=1e-4)
    out_b16 = jax.block_until_ready(residual_block(x, params_b, stride=1))  # bf16 default path
    np.testing.assert_allclose(np.asarray(out_b16), np.asarray(ref_b), rtol=1e-1, atol=1e-1)

    print("KERNEL_OK")
</pallas_src>

<mosaic_0001>
module attributes {stable_mosaic.version = 11 : i64} {
  func.func @kernel(%arg0: i32, %arg1: i32, %arg2: i32, %arg3: memref<64x128xf32, #tpu.memory_space<vmem>>, %arg4: memref<128x128xf32, #tpu.memory_space<vmem>>, %arg5: memref<1x128xf32, #tpu.memory_space<vmem>>, %arg6: memref<64x128xf32, #tpu.memory_space<vmem>>) attributes {dimension_semantics = [#tpu.dimension_semantics<parallel>, #tpu.dimension_semantics<parallel>, #tpu.dimension_semantics<arbitrary>], iteration_bounds = array<i64: 2, 1, 1>, scalar_prefetch = 0 : i64, scratch_operands = 0 : i64, tpu.core_type = #tpu.core_type<tc>, window_params = [{transform_indices = @transform_0, window_bounds = array<i64: 64, 128>}, {transform_indices = @transform_1, window_bounds = array<i64: 128, 128>}, {transform_indices = @transform_2, window_bounds = array<i64: 1, 128>}, {transform_indices = @transform_3, window_bounds = array<i64: 64, 128>}]} {
    %c0_i32 = arith.constant 0 : i32
    %0 = arith.cmpi eq, %arg2, %c0_i32 : i32
    %1 = arith.extui %0 : i1 to i32
    %c0_i32_0 = arith.constant 0 : i32
    %2 = arith.cmpi ne, %1, %c0_i32_0 : i32
    scf.if %2 {
      %cst_10 = arith.constant 0.000000e+00 : f32
      %12 = vector.broadcast %cst_10 : f32 to vector<64x128xf32>
      %c0_11 = arith.constant 0 : index
      %c0_12 = arith.constant 0 : index
      %13 = vector.load %arg6[%c0_11, %c0_12] : memref<64x128xf32, #tpu.memory_space<vmem>>, vector<64x128xf32>
      tpu.vector_store %arg6[%c0_11, %c0_12], %12 {strides = array<i32>} : memref<64x128xf32, #tpu.memory_space<vmem>>, vector<64x128xf32>,
    } else {
    }
    %c0 = arith.constant 0 : index
    %c0_1 = arith.constant 0 : index
    %3 = vector.load %arg6[%c0, %c0_1] : memref<64x128xf32, #tpu.memory_space<vmem>>, vector<64x128xf32>
    %c0_2 = arith.constant 0 : index
    %c0_3 = arith.constant 0 : index
    %4 = vector.load %arg3[%c0_2, %c0_3] : memref<64x128xf32, #tpu.memory_space<vmem>>, vector<64x128xf32>
    %c0_4 = arith.constant 0 : index
    %c0_5 = arith.constant 0 : index
    %5 = vector.load %arg4[%c0_4, %c0_5] : memref<128x128xf32, #tpu.memory_space<vmem>>, vector<128x128xf32>
    %cst = arith.constant dense<0.000000e+00> : vector<64x128xf32>
    %6 = tpu.matmul %4, %5, %cst {dimension_numbers = #tpu.dot_dimension_numbers<[1], [0], [0], [1], [0, 0, 1, 1], [], []>} : vector<64x128xf32>, vector<128x128xf32>, vector<64x128xf32> -> vector<64x128xf32>
    %7 = arith.addf %3, %6 : vector<64x128xf32>
    %c0_6 = arith.constant 0 : index
    %c0_7 = arith.constant 0 : index
    %8 = vector.load %arg6[%c0_6, %c0_7] : memref<64x128xf32, #tpu.memory_space<vmem>>, vector<64x128xf32>
    tpu.vector_store %arg6[%c0_6, %c0_7], %7 {strides = array<i32>} : memref<64x128xf32, #tpu.memory_space<vmem>>, vector<64x128xf32>,
    %c0_i32_8 = arith.constant 0 : i32
    %9 = arith.cmpi eq, %arg2, %c0_i32_8 : i32
    %10 = arith.extui %9 : i1 to i32
    %c0_i32_9 = arith.constant 0 : i32
    %11 = arith.cmpi ne, %10, %c0_i32_9 : i32
    scf.if %11 {
      %c0_10 = arith.constant 0 : index
      %c0_11 = arith.constant 0 : index
      %12 = vector.load %arg6[%c0_10, %c0_11] : memref<64x128xf32, #tpu.memory_space<vmem>>, vector<64x128xf32>
      %c0_12 = arith.constant 0 : index
      %c0_13 = arith.constant 0 : index
      %13 = vector.load %arg5[%c0_12, %c0_13] : memref<1x128xf32, #tpu.memory_space<vmem>>, vector<1x128xf32>
      %14 = vector.broadcast %13 : vector<1x128xf32> to vector<64x128xf32>
      %15 = arith.addf %12, %14 : vector<64x128xf32>
      %cst_14 = arith.constant 0.000000e+00 : f32
      %16 = vector.broadcast %cst_14 : f32 to vector<64x128xf32>
      %17 = arith.maximumf %15, %16 : vector<64x128xf32>
      %c0_15 = arith.constant 0 : index
      %c0_16 = arith.constant 0 : index
      %18 = vector.load %arg6[%c0_15, %c0_16] : memref<64x128xf32, #tpu.memory_space<vmem>>, vector<64x128xf32>
      tpu.vector_store %arg6[%c0_15, %c0_16], %17 {strides = array<i32>} : memref<64x128xf32, #tpu.memory_space<vmem>>, vector<64x128xf32>,
    } else {
    }
    return
  }
  func.func @transform_0(%arg0: i32, %arg1: i32, %arg2: i32) -> (i32, i32) {
    %c0_i32 = arith.constant 0 : i32
    return %arg0, %arg2 : i32, i32
  }
  func.func @transform_1(%arg0: i32, %arg1: i32, %arg2: i32) -> (i32, i32) {
    %c0_i32 = arith.constant 0 : i32
    return %arg2, %arg1 : i32, i32
  }
  func.func @transform_2(%arg0: i32, %arg1: i32, %arg2: i32) -> (i32, i32) {
    %c0_i32 = arith.constant 0 : i32
    %c0_i32_0 = arith.constant 0 : i32
    return %c0_i32, %arg1 : i32, i32
  }
  func.func @transform_3(%arg0: i32, %arg1: i32, %arg2: i32) -> (i32, i32) {
    %c0_i32 = arith.constant 0 : i32
    return %arg0, %arg1 : i32, i32
  }
}

</mosaic_0001>

<llo_original>
// kernel: residual_block.2
$region0: #{residual_block.2}
  #allocation0 [shape = 'u32[]', space=smem, size = 0x4, offset = 0x4, fixed_abs, tag = 'smem constant byte address 0x4 - core index']
  #allocation1 [shape = 'u32[144,128]{1,0:T(1,128)}', space=vmem, size = 0x12000, scoped, tag = 'internal scratch']
  %s0 = inlined_call_operand.vmem [shape: f32[128,128], index: 0, kind: input, shape index: {}]
  %s1 = inlined_call_operand.vmem [shape: f32[128,128], index: 1, kind: input, shape index: {}]
  %s2 = inlined_call_operand.vmem [shape: f32[1,128], index: 2, kind: input, shape index: {}]
  %s3 = inlined_call_operand.vmem [shape: f32[128,128], index: 3, kind: output, shape index: {}]
  %s4 = sld [smem:[#allocation0]]
  $region53: #{residual_block.2} parent=0
    _
  %s6 = ssub.s32 1, %s4
  %s7 = scalar_select 0, %s6, %s4
  loop: start=0, step=1, limit=4
  $region2: #{residual_block.2} parent=0 // loop_pre_header
    _
  $region3: #{residual_block.2} parent=0 // loop_header
    %s9 = sphi 0, %s13
    %p10 = scmp.ge.s32.totalorder %s9, 4
    %s16 = sphi 0, %s35
    %s17 = sphi 0, %s31
    %s18 = sphi 0, %s27
    %s19 = sphi 0, %s16
    %s20 = sphi 0, %s17
    %s21 = sphi 0, %s18
    %s22 = sphi 0, %s19
    %s23 = sphi 0, %s20
    %s24 = sphi 0, %s21
    %s40 = sphi 0, %s42
    %s43 = sphi 0, %s40
    %s44 = sphi 0, %s43
    %s60 = sphi 0, %s44
    %s68 = sphi 0, %s70
    %s71 = sphi 0, %s68
    %s72 = sphi 0, %s71
    %s88 = sphi 0, %s72
    %s94 = sphi 0, %s96
    %s97 = sphi 0, %s94
    %s98 = sphi 0, %s97
    %s114 = sphi 0, %s98
    %s122 = sphi 0, %s124
    %s125 = sphi 0, %s122
    %s126 = sphi 0, %s125
    %s142 = sphi 0, %s126
  $region4: #{residual_block.2} parent=0 // loop_header_branch
    %12 = sbr.rel (%p10) target = $region8
  $region5: #{residual_block.2} parent=0 // loop_body
    %s14 = ssub.s32 %s9, 1
    %s15 = ssub.s32 %s9, 2
    %s25 = sadd.s32 1, %s18
    %p26 = scmp.ge.s32.totalorder %s25, 1
    %s27 = scalar_select %p26, 0, %s25
    %s28 = sadd.s32 1, %s17
    %s29 = scalar_select %p26, %s28, %s17
    %p30 = scmp.ge.s32.totalorder %s29, 1
    %s31 = scalar_select %p30, 0, %s29
    %s32 = sadd.s32 1, %s16
    %s33 = scalar_select %p30, %s32, %s16
    %p34 = scmp.ge.s32.totalorder %s33, 2
    %s35 = scalar_select %p34, 0, %s33
    %s36 = ssub.s32 %s16, %s35
    %s37 = ssub.s32 %s18, %s27
    %s38 = sor.u32 %s36, %s37
    %p39 = scmp.eq.s32.totalorder %s38, 0
    %s41 = sadd.s32 %s40, 1
    %s42 = scalar_select %p39, %s40, %s41
    %p45 = pneg %p39
    %p46 = scmp.eq.s32.totalorder %s9, 1
    %p47 = por %p45, %p46
    %p48 = scmp.ne.s32.totalorder %s40, %s43
    %p49 = scmp.eq.s32.totalorder %s9, 0
    %p50 = por %p48, %p49
    %p51 = scmp.ne.s32.totalorder %s40, %s43
    %p52 = scmp.eq.s32.totalorder %s14, 1
    %p53 = por %p51, %p52
    %p54 = scmp.ne.s32.totalorder %s43, %s44
    %p55 = scmp.eq.s32.totalorder %s14, 0
    %p56 = por %p54, %p55
    %p57 = scmp.ne.s32.totalorder %s43, %s44
    %p58 = scmp.eq.s32.totalorder %s15, 1
    %p59 = por %p57, %p58
    %p61 = scmp.ne.s32.totalorder %s44, %s60
    %p62 = scmp.eq.s32.totalorder %s15, 0
    %p63 = por %p61, %p62
    %s64 = ssub.s32 %s18, %s27
    %s65 = ssub.s32 %s17, %s31
    %s66 = sor.u32 %s64, %s65
    %p67 = scmp.eq.s32.totalorder %s66, 0
    %s69 = sadd.s32 %s68, 1
    %s70 = scalar_select %p67, %s68, %s69
    %p73 = pneg %p67
    %p74 = scmp.eq.s32.totalorder %s9, 1
    %p75 = por %p73, %p74
    %p76 = scmp.ne.s32.totalorder %s68, %s71
    %p77 = scmp.eq.s32.totalorder %s9, 0
    %p78 = por %p76, %p77
    %p79 = scmp.ne.s32.totalorder %s68, %s71
    %p80 = scmp.eq.s32.totalorder %s14, 1
    %p81 = por %p79, %p80
    %p82 = scmp.ne.s32.totalorder %s71, %s72
    %p83 = scmp.eq.s32.totalorder %s14, 0
    %p84 = por %p82, %p83
    %p85 = scmp.ne.s32.totalorder %s71, %s72
    %p86 = scmp.eq.s32.totalorder %s15, 1
    %p87 = por %p85, %p86
    %p89 = scmp.ne.s32.totalorder %s72, %s88
    %p90 = scmp.eq.s32.totalorder %s15, 0
    %p91 = por %p89, %p90
    %s92 = ssub.s32 %s17, %s31
    %p93 = scmp.eq.s32.totalorder %s92, 0
    %s95 = sadd.s32 %s94, 1
    %s96 = scalar_select %p93, %s94, %s95
    %p99 = pneg %p93
    %p100 = scmp.eq.s32.totalorder %s9, 1
    %p101 = por %p99, %p100
    %p102 = scmp.ne.s32.totalorder %s94, %s97
    %p103 = scmp.eq.s32.totalorder %s9, 0
    %p104 = por %p102, %p103
    %p105 = scmp.ne.s32.totalorder %s94, %s97
    %p106 = scmp.eq.s32.totalorder %s14, 1
    %p107 = por %p105, %p106
    %p108 = scmp.ne.s32.totalorder %s97, %s98
    %p109 = scmp.eq.s32.totalorder %s14, 0
    %p110 = por %p108, %p109
    %p111 = scmp.ne.s32.totalorder %s97, %s98
    %p112 = scmp.eq.s32.totalorder %s15, 1
    %p113 = por %p111, %p112
    %p115 = scmp.ne.s32.totalorder %s98, %s114
    %p116 = scmp.eq.s32.totalorder %s15, 0
    %p117 = por %p115, %p116
    %s118 = ssub.s32 %s16, %s35
    %s119 = ssub.s32 %s17, %s31
    %s120 = sor.u32 %s118, %s119
    %p121 = scmp.eq.s32.totalorder %s120, 0
    %s123 = sadd.s32 %s122, 1
    %s124 = scalar_select %p121, %s122, %s123
    %p127 = pneg %p121
    %p128 = scmp.eq.s32.totalorder %s9, 1
    %p129 = por %p127, %p128
    %p130 = scmp.ne.s32.totalorder %s122, %s125
    %p131 = scmp.eq.s32.totalorder %s9, 0
    %p132 = por %p130, %p131
    %p133 = scmp.ne.s32.totalorder %s122, %s125
    %p134 = scmp.eq.s32.totalorder %s14, 1
    %p135 = por %p133, %p134
    %p136 = scmp.ne.s32.totalorder %s125, %s126
    %p137 = scmp.eq.s32.totalorder %s14, 0
    %p138 = por %p136, %p137
    %p139 = scmp.ne.s32.totalorder %s125, %s126
    %p140 = scmp.eq.s32.totalorder %s15, 1
    %p141 = por %p139, %p140
    %p143 = scmp.ne.s32.totalorder %s126, %s142
    %p144 = scmp.eq.s32.totalorder %s15, 0
    %p145 = por %p143, %p144
    %p146 = scmp.le.s32.totalorder 1, %s9
    %p147 = scmp.lt.s32.totalorder %s9, 3
    %p148 = pnand %p146, %p147
    %p149 = pneg %p148
    // Predicated region
    $region9: #{residual_block.2} parent=5 // pred_check
      _
    $region10: #{residual_block.2} parent=5 // pred_check_branch
      %151 = sbr.rel (%p148) target = $region12
    $region11: #{residual_block.2} parent=5 // pred_region
      %s152 = ssub.s32 %s9, 1
      // Predicated region
      $region13: #{residual_block.2} parent=11 // pred_check
        %p153 = pneg %p84
      $region14: #{residual_block.2} parent=11 // pred_check_branch
        %155 = sbr.rel (%p153) target = $region16
      $region15: #{residual_block.2} parent=11 // pred_region
        %s156 = smul.u32 16, %s21
        %p157 = scmp.lt.s32.totalorder %s156, 15
        %s158 = scalar_select %p157, %s156, 15
        %p159 = scmp.lt.s32.totalorder %s20, 0
        %s160 = scalar_select %p159, %s20, 0
        %s161 = sadd.s32 %s160, %s158
        %s162 = smul.addr %s161, 8
        %s163 = scalar_lea.vmem %s1, %s162
        %s164 = smul.u32 16, %s21
      $region16: #{residual_block.2} parent=11 // pred_fallthru
        _
      // Predicated region
      $region17: #{residual_block.2} parent=11 // pred_check
        %p165 = pneg %p110
      $region18: #{residual_block.2} parent=11 // pred_check_branch
        %167 = sbr.rel (%p165) target = $region20
      $region19: #{residual_block.2} parent=11 // pred_region
        %p168 = scmp.lt.s32.totalorder %s20, 0
        %s169 = scalar_select %p168, %s20, 0
        %s170 = scalar_lea.vmem %s2, %s169
      $region20: #{residual_block.2} parent=11 // pred_fallthru
        _
    $region12: #{residual_block.2} parent=5 // pred_fallthru
      _
    %p171 = scmp.lt.s32.totalorder %s9, 2
    // Predicated region
    $region21: #{residual_block.2} parent=5 // pred_check
      %p172 = pneg %p171
    $region22: #{residual_block.2} parent=5 // pred_check_branch
      %174 = sbr.rel (%p172) target = $region24
    $region23: #{residual_block.2} parent=5 // pred_region
      // Predicated region
      $region25: #{residual_block.2} parent=23 // pred_check
        %p175 = pneg %p50
      $region26: #{residual_block.2} parent=23 // pred_check_branch
        %177 = sbr.rel (%p175) target = $region28
      $region27: #{residual_block.2} parent=23 // pred_region
        %s178 = smul.u32 8, %s16
        %p179 = scmp.lt.s32.totalorder %s178, 15
        %s180 = scalar_select %p179, %s178, 15
        %p181 = scmp.lt.s32.totalorder %s18, 0
        %s182 = scalar_select %p181, %s18, 0
        %s183 = sadd.s32 %s182, %s180
        %s184 = smul.addr %s183, 8
        %s185 = scalar_lea.vmem %s0, %s184
        %s186 = smul.u32 8, %s16
      $region28: #{residual_block.2} parent=23 // pred_fallthru
        _
    $region24: #{residual_block.2} parent=5 // pred_fallthru
      _
    %p187 = scmp.le.s32.totalorder 1, %s9
    %p188 = scmp.lt.s32.totalorder %s9, 3
    %p189 = pnand %p187, %p188
    %p190 = pneg %p189
    // Predicated region
    $region29: #{residual_block.2} parent=5 // pred_check
      _
    $region30: #{residual_block.2} parent=5 // pred_check_branch
      %192 = sbr.rel (%p189) target = $region32
    $region31: #{residual_block.2} parent=5 // pred_region
      %s193 = ssub.s32 %s9, 1
      %s194 = smul.u32 8, %s19
      %p195 = scmp.lt.s32.totalorder %s194, 15
      %s196 = scalar_select %p195, %s194, 15
      %p197 = scmp.lt.s32.totalorder %s21, 0
      %s198 = scalar_select %p197, %s21, 0
      %s199 = sadd.s32 %s198, %s196
      %s200 = smul.addr %s199, 8
      %s201 = scalar_lea.vmem %s0, %s200
      %p202 = pneg %p56
      %p203 = pneg %p53
      %s204 = smul.u32 16, %s21
      %p205 = scmp.lt.s32.totalorder %s204, 15
      %s206 = scalar_select %p205, %s204, 15
      %p207 = scmp.lt.s32.totalorder %s20, 0
      %s208 = scalar_select %p207, %s20, 0
      %s209 = sadd.s32 %s208, %s206
      %s210 = smul.addr %s209, 8
      %s211 = scalar_lea.vmem %s1, %s210
      %p212 = pneg %p84
      %p213 = pneg %p81
      %p214 = scmp.lt.s32.totalorder %s20, 0
      %s215 = scalar_select %p214, %s20, 0
      %s216 = scalar_lea.vmem %s2, %s215
      %p217 = pneg %p110
      %p218 = pneg %p107
      %p219 = pneg %p138
      %p220 = pneg %p135
      %s221 = smul.u32 8, %s19
      %p222 = scmp.lt.s32.totalorder %s221, 15
      %s223 = scalar_select %p222, %s221, 15
      %p224 = scmp.lt.s32.totalorder %s20, 0
      %s225 = scalar_select %p224, %s20, 0
      %s226 = sadd.s32 %s225, %s223
      %s227 = smul.addr %s226, 8
      %s228 = scalar_lea.vmem %s3, %s227
      %s229 = smul.u32 8, %s19
      %p230 = scmp.lt.s32.totalorder %s229, 15
      %s231 = scalar_select %p230, %s229, 15
      %p232 = scmp.lt.s32.totalorder %s21, 0
      %s233 = scalar_select %p232, %s21, 0
      %s234 = sadd.s32 %s233, %s231
      %s235 = smul.addr %s234, 8
      %s236 = scalar_lea.vmem %s0, %s235
      %s237 = smul.u32 8, %s19
      %s238 = smul.u32 16, %s21
      %p239 = scmp.lt.s32.totalorder %s238, 15
      %s240 = scalar_select %p239, %s238, 15
      %p241 = scmp.lt.s32.totalorder %s20, 0
      %s242 = scalar_select %p241, %s20, 0
      %s243 = sadd.s32 %s242, %s240
      %s244 = smul.addr %s243, 8
      %s245 = scalar_lea.vmem %s1, %s244
      %s246 = smul.u32 16, %s21
      %p247 = scmp.lt.s32.totalorder %s20, 0
      %s248 = scalar_select %p247, %s20, 0
      %s249 = scalar_lea.vmem %s2, %s248
      %s250 = smul.u32 8, %s19
      %p251 = scmp.lt.s32.totalorder %s250, 15
      %s252 = scalar_select %p251, %s250, 15
      %p253 = scmp.lt.s32.totalorder %s20, 0
      %s254 = scalar_select %p253, %s20, 0
      %s255 = sadd.s32 %s254, %s252
      %s256 = smul.addr %s255, 8
      %s257 = scalar_lea.vmem %s3, %s256
      %s258 = smul.u32 8, %s19
      %p259 = scmp.eq.s32.totalorder %s21, 0
      // Predicated region
      $region33: #{residual_block.2} parent=31 // pred_check
        %p260 = pneg %p259
      $region34: #{residual_block.2} parent=31 // pred_check_branch
        %262 = sbr.rel (%p260) target = $region36
      $region35: #{residual_block.2} parent=31 // pred_region
        %263 = vst [vmem:[%s257] sm:$0xff] 0.0
        %264 = vst [vmem:[%s257 + $0x8] sm:$0xff] 0.0
        %265 = vst [vmem:[%s257 + $0x10] sm:$0xff] 0.0
        %266 = vst [vmem:[%s257 + $0x18] sm:$0xff] 0.0
        %267 = vst [vmem:[%s257 + $0x20] sm:$0xff] 0.0
        %268 = vst [vmem:[%s257 + $0x28] sm:$0xff] 0.0
        %269 = vst [vmem:[%s257 + $0x30] sm:$0xff] 0.0
        %270 = vst [vmem:[%s257 + $0x38] sm:$0xff] 0.0
      $region36: #{residual_block.2} parent=31 // pred_fallthru
        _
      %v271 = vld [vmem:[%s257] sm:$0xff]
      %v272 = vld [vmem:[%s257 + $0x8] sm:$0xff]
      %v273 = vld [vmem:[%s257 + $0x10] sm:$0xff]
      %v274 = vld [vmem:[%s257 + $0x18] sm:$0xff]
      %v275 = vld [vmem:[%s257 + $0x20] sm:$0xff]
      %v276 = vld [vmem:[%s257 + $0x28] sm:$0xff]
      %v277 = vld [vmem:[%s257 + $0x30] sm:$0xff]
      %v278 = vld [vmem:[%s257 + $0x38] sm:$0xff]
      %v279 = vld [vmem:[%s236] sm:$0xff]
      %v280 = vld [vmem:[%s236 + $0x8] sm:$0xff]
      %v281 = vld [vmem:[%s236 + $0x10] sm:$0xff]
      %v282 = vld [vmem:[%s236 + $0x18] sm:$0xff]
      %v283 = vld [vmem:[%s236 + $0x20] sm:$0xff]
      %v284 = vld [vmem:[%s236 + $0x28] sm:$0xff]
      %v285 = vld [vmem:[%s236 + $0x30] sm:$0xff]
      %v286 = vld [vmem:[%s236 + $0x38] sm:$0xff]
      %v287 = vld [vmem:[%s245] sm:$0xff]
      %v288 = vld [vmem:[%s245 + $0x8] sm:$0xff]
      %v289 = vld [vmem:[%s245 + $0x10] sm:$0xff]
      %v290 = vld [vmem:[%s245 + $0x18] sm:$0xff]
      %v291 = vld [vmem:[%s245 + $0x20] sm:$0xff]
      %v292 = vld [vmem:[%s245 + $0x28] sm:$0xff]
      %v293 = vld [vmem:[%s245 + $0x30] sm:$0xff]
      %v294 = vld [vmem:[%s245 + $0x38] sm:$0xff]
      %v295 = vld [vmem:[%s245 + $0x40] sm:$0xff]
      %v296 = vld [vmem:[%s245 + $0x48] sm:$0xff]
      %v297 = vld [vmem:[%s245 + $0x50] sm:$0xff]
      %v298 = vld [vmem:[%s245 + $0x58] sm:$0xff]
      %v299 = vld [vmem:[%s245 + $0x60] sm:$0xff]
      %v300 = vld [vmem:[%s245 + $0x68] sm:$0xff]
      %v301 = vld [vmem:[%s245 + $0x70] sm:$0xff]
      %v302 = vld [vmem:[%s245 + $0x78] sm:$0xff]
      %303 = vmatprep.subr.mxu0 0.0
      %304 = vmatpush1.msra.mxu0 %v287
      %305 = vmatprep.subr.mxu0 0.0
      %306 = vmatpush1.msra.mxu0 %v288
      %307 = vmatprep.subr.mxu0 0.0
      %308 = vmatpush1.msra.mxu0 %v289
      %309 = vmatprep.subr.mxu0 0.0
      %310 = vmatpush1.msra.mxu0 %v290
      %311 = vmatprep.subr.mxu0 0.0
      %312 = vmatpush1.msra.mxu0 %v291
      %313 = vmatprep.subr.mxu0 0.0
      %314 = vmatpush1.msra.mxu0 %v292
      %315 = vmatprep.subr.mxu0 0.0
      %316 = vmatpush1.msra.mxu0 %v293
      %317 = vmatprep.subr.mxu0 0.0
      %318 = vmatpush1.msra.mxu0 %v294
      %319 = vmatprep.subr.mxu0 0.0
      %320 = vmatpush1.msra.mxu0 %v295
      %321 = vmatprep.subr.mxu0 0.0
      %322 = vmatpush1.msra.mxu0 %v296
      %323 = vmatprep.subr.mxu0 0.0
      %324 = vmatpush1.msra.mxu0 %v297
      %325 = vmatprep.subr.mxu0 0.0
      %326 = vmatpush1.msra.mxu0 %v298
      %327 = vmatprep.subr.mxu0 0.0
      %328 = vmatpush1.msra.mxu0 %v299
      %329 = vmatprep.subr.mxu0 0.0
      %330 = vmatpush1.msra.mxu0 %v300
      %331 = vmatprep.subr.mxu0 0.0
      %332 = vmatpush1.msra.mxu0 %v301
      %333 = vmatprep.subr.mxu0 0.0
      %334 = vmatpush1.msra.mxu0 %v302
      %335 = vmatprep.subr.mxu0 0.0
      %336 = vmatpush1.msra.mxu0 0.0
      %337 = vmatprep.subr.mxu0 0.0
      %338 = vmatpush1.msra.mxu0 0.0
      %339 = vmatprep.subr.mxu0 0.0
      %340 = vmatpush1.msra.mxu0 0.0
      %341 = vmatprep.subr.mxu0 0.0
      %342 = vmatpush1.msra.mxu0 0.0
      %343 = vmatprep.subr.mxu0 0.0
      %344 = vmatpush1.msra.mxu0 0.0
      %345 = vmatprep.subr.mxu0 0.0
      %346 = vmatpush1.msra.mxu0 0.0
      %347 = vmatprep.subr.mxu0 0.0
      %348 = vmatpush1.msra.mxu0 0.0
      %349 = vmatprep.subr.mxu0 0.0
      %350 = vmatpush1.msra.mxu0 0.0
      %351 = vmatprep.subr.mxu0 0.0
      %352 = vmatpush1.msra.mxu0 0.0
      %353 = vmatprep.subr.mxu0 0.0
      %354 = vmatpush1.msra.mxu0 0.0
      %355 = vmatprep.subr.mxu0 0.0
      %356 = vmatpush1.msra.mxu0 0.0
      %357 = vmatprep.subr.mxu0 0.0
      %358 = vmatpush1.msra.mxu0 0.0
      %359 = vmatprep.subr.mxu0 0.0
      %360 = vmatpush1.msra.mxu0 0.0
      %361 = vmatprep.subr.mxu0 0.0
      %362 = vmatpush1.msra.mxu0 0.0
      %363 = vmatprep.subr.mxu0 0.0
      %364 = vmatpush1.msra.mxu0 0.0
      %365 = vmatprep.subr.mxu0 0.0
      %366 = vmatpush1.msra.mxu0 0.0
      %367 = vmatprep.mubr.f32.mxu0 0.0
      %368 = vmatmul.mubr.f32.gmra.mrb[0].mxu0 %v279
      %v369 = vpop.f32.mrb[0].mxu0
      %v370 = vadd.f32 0.0, %v369
      %v371 = vpop.f32.mrb[0].mxu0
      %372 = vmatprep.mubr.f32.mxu0 0.0
      %373 = vmatmul.mubr.f32.gmra.mrb[0].mxu0 %v280
      %v374 = vpop.f32.mrb[0].mxu0
      %v375 = vadd.f32 0.0, %v374
      %v376 = vpop.f32.mrb[0].mxu0
      %377 = vmatprep.mubr.f32.mxu0 0.0
      %378 = vmatmul.mubr.f32.gmra.mrb[0].mxu0 %v281
      %v379 = vpop.f32.mrb[0].mxu0
      %v380 = vadd.f32 0.0, %v379
      %v381 = vpop.f32.mrb[0].mxu0
      %382 = vmatprep.mubr.f32.mxu0 0.0
      %383 = vmatmul.mubr.f32.gmra.mrb[0].mxu0 %v282
      %v384 = vpop.f32.mrb[0].mxu0
      %v385 = vadd.f32 0.0, %v384
      %v386 = vpop.f32.mrb[0].mxu0
      %387 = vmatprep.mubr.f32.mxu0 0.0
      %388 = vmatmul.mubr.f32.gmra.mrb[0].mxu0 %v283
      %v389 = vpop.f32.mrb[0].mxu0
      %v390 = vadd.f32 0.0, %v389
      %v391 = vpop.f32.mrb[0].mxu0
      %392 = vmatprep.mubr.f32.mxu0 0.0
      %393 = vmatmul.mubr.f32.gmra.mrb[0].mxu0 %v284
      %v394 = vpop.f32.mrb[0].mxu0
      %v395 = vadd.f32 0.0, %v394
      %v396 = vpop.f32.mrb[0].mxu0
      %397 = vmatprep.mubr.f32.mxu0 0.0
      %398 = vmatmul.mubr.f32.gmra.mrb[0].mxu0 %v285
      %v399 = vpop.f32.mrb[0].mxu0
      %v400 = vadd.f32 0.0, %v399
      %v401 = vpop.f32.mrb[0].mxu0
      %402 = vmatprep.mubr.f32.mxu0 0.0
      %403 = vmatmul.mubr.f32.gmra.mrb[0].mxu0 %v286
      %v404 = vpop.f32.mrb[0].mxu0
      %v405 = vadd.f32 0.0, %v404
      %v406 = vpop.f32.mrb[0].mxu0
      %407 = vdwg.mxu0
      %v408 = vadd.f32 %v271, %v370
      %v409 = vadd.f32 %v272, %v375
      %v410 = vadd.f32 %v273, %v380
      %v411 = vadd.f32 %v274, %v385
      %v412 = vadd.f32 %v275, %v390
      %v413 = vadd.f32 %v276, %v395
      %v414 = vadd.f32 %v277, %v400
      %v415 = vadd.f32 %v278, %v405
      %416 = vst [vmem:[%s257] sm:$0xff] %v408
      %417 = vst [vmem:[%s257 + $0x8] sm:$0xff] %v409
      %418 = vst [vmem:[%s257 + $0x10] sm:$0xff] %v410
      %419 = vst [vmem:[%s257 + $0x18] sm:$0xff] %v411
      %420 = vst [vmem:[%s257 + $0x20] sm:$0xff] %v412
      %421 = vst [vmem:[%s257 + $0x28] sm:$0xff] %v413
      %422 = vst [vmem:[%s257 + $0x30] sm:$0xff] %v414
      %423 = vst [vmem:[%s257 + $0x38] sm:$0xff] %v415
      // Predicated region
      $region37: #{residual_block.2} parent=31 // pred_check
        %p424 = pneg %p259
      $region38: #{residual_block.2} parent=31 // pred_check_branch
        %426 = sbr.rel (%p424) target = $region40
      $region39: #{residual_block.2} parent=31 // pred_region
        %v427 = vld [vmem:[%s257] sm:$0xff]
        %v428 = vld [vmem:[%s257 + $0x8] sm:$0xff]
        %v429 = vld [vmem:[%s257 + $0x10] sm:$0xff]
        %v430 = vld [vmem:[%s257 + $0x18] sm:$0xff]
        %v431 = vld [vmem:[%s257 + $0x20] sm:$0xff]
        %v432 = vld [vmem:[%s257 + $0x28] sm:$0xff]
        %v433 = vld [vmem:[%s257 + $0x30] sm:$0xff]
        %v434 = vld [vmem:[%s257 + $0x38] sm:$0xff]
        %v435 = vld [vmem:[%s249] sm:$0x1]
        %v437 = vlaneseq
        %v438 = vshrl.u32 %v437, 7
        %v439 = vsub.s32 0, %v438
        %v440 = vrot.slane %v435, %v439
        %v442 = vadd.f32 %v427, %v440
        %v443 = vadd.f32 %v428, %v440
        %v444 = vadd.f32 %v429, %v440
        %v445 = vadd.f32 %v430, %v440
        %v446 = vadd.f32 %v431, %v440
        %v447 = vadd.f32 %v432, %v440
        %v448 = vadd.f32 %v433, %v440
        %v449 = vadd.f32 %v434, %v440
        %v450 = vmax.f32 %v442, 0.0
        %v451 = vmax.f32 %v443, 0.0
        %v452 = vmax.f32 %v444, 0.0
        %v453 = vmax.f32 %v445, 0.0
        %v454 = vmax.f32 %v446, 0.0
        %v455 = vmax.f32 %v447, 0.0
        %v456 = vmax.f32 %v448, 0.0
        %v457 = vmax.f32 %v449, 0.0
        %458 = vst [vmem:[%s257] sm:$0xff] %v450
        %459 = vst [vmem:[%s257 + $0x8] sm:$0xff] %v451
        %460 = vst [vmem:[%s257 + $0x10] sm:$0xff] %v452
        %461 = vst [vmem:[%s257 + $0x18] sm:$0xff] %v453
        %462 = vst [vmem:[%s257 + $0x20] sm:$0xff] %v454
        %463 = vst [vmem:[%s257 + $0x28] sm:$0xff] %v455
        %464 = vst [vmem:[%s257 + $0x30] sm:$0xff] %v456
        %465 = vst [vmem:[%s257 + $0x38] sm:$0xff] %v457
      $region40: #{residual_block.2} parent=31 // pred_fallthru
        _
      %s466 = smul.u32 8, %s19
      %p467 = scmp.lt.s32.totalorder %s466, 15
      %s468 = scalar_select %p467, %s466, 15
      %p469 = scmp.lt.s32.totalorder %s20, 0
      %s470 = scalar_select %p469, %s20, 0
      %s471 = sadd.s32 %s470, %s468
      %s472 = smul.addr %s471, 8
      %s473 = scalar_lea.vmem %s3, %s472
      // Predicated region
      $region41: #{residual_block.2} parent=31 // pred_check
        %p474 = pneg %p135
      $region42: #{residual_block.2} parent=31 // pred_check_branch
        %476 = sbr.rel (%p474) target = $region44
      $region43: #{residual_block.2} parent=31 // pred_region
        %s477 = smul.u32 8, %s19
      $region44: #{residual_block.2} parent=31 // pred_fallthru
        _
    $region32: #{residual_block.2} parent=5 // pred_fallthru
      _
    %p478 = scmp.le.s32.totalorder 2, %s9
    // Predicated region
    $region45: #{residual_block.2} parent=5 // pred_check
      %p479 = pneg %p478
    $region46: #{residual_block.2} parent=5 // pred_check_branch
      %481 = sbr.rel (%p479) target = $region48
    $region47: #{residual_block.2} parent=5 // pred_region
      %s482 = ssub.s32 %s9, 2
      // Predicated region
      $region49: #{residual_block.2} parent=47 // pred_check
        %p483 = pneg %p141
      $region50: #{residual_block.2} parent=47 // pred_check_branch
        %485 = sbr.rel (%p483) target = $region52
      $region51: #{residual_block.2} parent=47 // pred_region
        %s486 = smul.u32 8, %s22
        %p487 = scmp.lt.s32.totalorder %s486, 15
        %s488 = scalar_select %p487, %s486, 15
        %p489 = scmp.lt.s32.totalorder %s23, 0
        %s490 = scalar_select %p489, %s23, 0
        %s491 = sadd.s32 %s490, %s488
        %s492 = smul.addr %s491, 8
        %s493 = scalar_lea.vmem %s3, %s492
      $region52: #{residual_block.2} parent=47 // pred_fallthru
        _
    $region48: #{residual_block.2} parent=5 // pred_fallthru
      _
  $region6: #{residual_block.2} parent=0 // loop_footer
    %s13 = sadd.s32 1, %s9
  $region7: #{residual_block.2} parent=0 // loop_footer_branch
    %8 = sbr.rel target = $region3
  $region8: #{residual_block.2} parent=0 // loop_exit
    _

</llo_original>
